<compile_context>
chip_gen: v7x
topology: tpu7x:2x2x1
jax: 0.10.0
libtpu: 0.0.40
codegen_flags: <defaults>
</compile_context>

<pallas_src>
from functools import partial

import jax
import jax.numpy as jnp
from jax import lax
from jax.experimental import pallas as pl
from jax.experimental.pallas import tpu as pltpu
import numpy as np

IN_FEATURES = 10   # matches Adapter(in_features=10)
HIDDEN = 64        # downscale -> 64, upscale -> in_features

_INV_SQRT2 = np.float32(0.7071067811865476)


def _gelu_exact(x):
    # torch nn.GELU() default (approximate='none'): 0.5*x*(1+erf(x/sqrt(2)))
    return 0.5 * x * (1.0 + lax.erf(x * _INV_SQRT2))


def _softplus(x):
    # torch nn.Softplus(beta=1, threshold=20)
    return jnp.where(x > 20.0, x, jnp.log1p(jnp.exp(jnp.minimum(x, 20.0))))


def adapter_kernel(x_ref, wf_ref, bf_ref, wu_ref, bu_ref, o_ref, *, B, S):
    # x_ref: (B*S, F) flat rows; single grid step, everything resident in VMEM.
    x2 = x_ref[...]                                                    # (B*S, F)
    # fused (pretrained @ downscale) linear + GELU
    h = jnp.dot(x2, wf_ref[...], preferred_element_type=jnp.float32) + bf_ref[...]
    h = _gelu_exact(h)                                                 # (B*S, H)
    # upscale linear + GELU
    u = jnp.dot(h, wu_ref[...], preferred_element_type=jnp.float32) + bu_ref[...]
    u = _gelu_exact(u)                                                 # (B*S, F)
    # mean over the sequence axis (torch dim=1), then Softplus
    F = u.shape[-1]
    m = jnp.mean(u.reshape(B, S, F), axis=1)                           # (B, F)
    # TODO(synk): output lane dim (F=10) < 128 lowers to masked partial stores;
    # negligible here, revisit if the adapter is scaled up.
    o_ref[...] = _softplus(m).astype(o_ref.dtype)


@jax.jit
def adapter_forward(x, wf, bf, wu, bu):
    """x: (B, S, F). wf/bf are the pre-fused (pretrained @ downscale) weights,
    stored (in, out); wu is (H, F); biases are (1, out)."""
    B, S, F = x.shape
    H = wf.shape[1]

    x2 = x.reshape(B * S, F)   # free metadata reshape in XLA

    flops = 2 * B * S * (F * H + H * F)
    transcendentals = B * S * (H + F) + B * F
    bytes_accessed = 4 * (B * S * F + F * H + H + H * F + F + B * F)

    vmem = pltpu.MemorySpace.VMEM
    out = pl.pallas_call(
        partial(adapter_kernel, B=B, S=S),
        out_shape=jax.ShapeDtypeStruct((B, F), jnp.float32),
        in_specs=[
            pl.BlockSpec(memory_space=vmem),   # x (B*S, F)
            pl.BlockSpec(memory_space=vmem),   # fused W  (Wp @ Wd)   (F, H)
            pl.BlockSpec(memory_space=vmem),   # fused bias           (1, H)
            pl.BlockSpec(memory_space=vmem),   # upscale W            (H, F)
            pl.BlockSpec(memory_space=vmem),   # upscale bias         (1, F)
        ],
        out_specs=pl.BlockSpec(memory_space=vmem),
        cost_estimate=pl.CostEstimate(
            flops=flops,
            transcendentals=transcendentals,
            bytes_accessed=bytes_accessed),
    )(x2, wf, bf, wu, bu)
    return out


def fuse_frozen_weights(wp, bp, wd, bd):
    """One-time (init-time) algebraic fusion of the frozen pretrained Linear
    with the downscale Linear: no nonlinearity sits between them."""
    wf = jnp.dot(wp, wd, preferred_element_type=jnp.float32)           # (F, H)
    bf = jnp.dot(bp, wd, preferred_element_type=jnp.float32) + bd      # (1, H)
    return wf, bf


def adapter_reference(x, wp, bp, wd, bd, wu, bu):
    """Pure-JAX reference mirroring the (unfused) torch forward, for verification."""
    y = jnp.einsum("bsf,fg->bsg", x, wp) + bp
    h = _gelu_exact(jnp.einsum("bsf,fh->bsh", y, wd) + bd)
    u = _gelu_exact(jnp.einsum("bsh,hf->bsf", h, wu) + bu)
    m = jnp.mean(u, axis=1)
    return _softplus(m)


if __name__ == "__main__":
    B, S, F, H = 2, 8, IN_FEATURES, HIDDEN

    key = jax.random.PRNGKey(0)
    kx, kwp, kbp, kwd, kbd, kwu, kbu = jax.random.split(key, 7)

    x = jax.random.normal(kx, (B, S, F), dtype=jnp.float32)

    # Deterministic parameter init (torch Linear stores (out, in); we keep
    # them pre-transposed as (in, out) so the kernel does plain row-major dots).
    wp = jax.random.normal(kwp, (F, F), dtype=jnp.float32) * (1.0 / np.sqrt(F))
    bp = jax.random.normal(kbp, (1, F), dtype=jnp.float32) * 0.1
    wd = jax.random.normal(kwd, (F, H), dtype=jnp.float32) * (1.0 / np.sqrt(F))
    bd = jax.random.normal(kbd, (1, H), dtype=jnp.float32) * 0.1
    wu = jax.random.normal(kwu, (H, F), dtype=jnp.float32) * (1.0 / np.sqrt(H))
    bu = jax.random.normal(kbu, (1, F), dtype=jnp.float32) * 0.1

    # Fuse the frozen pretrained + downscale weights ONCE at init.
    wf, bf = fuse_frozen_weights(wp, bp, wd, bd)
    wf, bf = jax.block_until_ready((wf, bf))

    out = adapter_forward(x, wf, bf, wu, bu)
    out = jax.block_until_ready(out)

    ref = adapter_reference(x, wp, bp, wd, bd, wu, bu)
    np.testing.assert_allclose(np.asarray(out), np.asarray(ref),
                               rtol=1e-5, atol=1e-5)

    print("KERNEL_OK")
</pallas_src>

<mosaic_0001>
module attributes {stable_mosaic.version = 11 : i64} {
  func.func @adapter_kernel(%arg0: memref<16x10xf32, #tpu.memory_space<vmem>>, %arg1: memref<10x64xf32, #tpu.memory_space<vmem>>, %arg2: memref<1x64xf32, #tpu.memory_space<vmem>>, %arg3: memref<64x10xf32, #tpu.memory_space<vmem>>, %arg4: memref<1x10xf32, #tpu.memory_space<vmem>>, %arg5: memref<2x10xf32, #tpu.memory_space<vmem>>) attributes {dimension_semantics = [], scalar_prefetch = 0 : i64, scratch_operands = 0 : i64, tpu.core_type = #tpu.core_type<tc>} {
    %c0 = arith.constant 0 : index
    %c0_0 = arith.constant 0 : index
    %0 = vector.load %arg0[%c0, %c0_0] : memref<16x10xf32, #tpu.memory_space<vmem>>, vector<16x10xf32>
    %c0_1 = arith.constant 0 : index
    %c0_2 = arith.constant 0 : index
    %1 = vector.load %arg1[%c0_1, %c0_2] : memref<10x64xf32, #tpu.memory_space<vmem>>, vector<10x64xf32>
    %cst = arith.constant dense<0.000000e+00> : vector<16x64xf32>
    %2 = tpu.matmul %0, %1, %cst {dimension_numbers = #tpu.dot_dimension_numbers<[1], [0], [0], [1], [0, 0, 1, 1], [], []>} : vector<16x10xf32>, vector<10x64xf32>, vector<16x64xf32> -> vector<16x64xf32>
    %c0_3 = arith.constant 0 : index
    %c0_4 = arith.constant 0 : index
    %3 = vector.load %arg2[%c0_3, %c0_4] : memref<1x64xf32, #tpu.memory_space<vmem>>, vector<1x64xf32>
    %4 = vector.broadcast %3 : vector<1x64xf32> to vector<16x64xf32>
    %5 = arith.addf %2, %4 : vector<16x64xf32>
    %cst_5 = arith.constant 5.000000e-01 : f32
    %6 = vector.broadcast %cst_5 : f32 to vector<16x64xf32>
    %7 = arith.mulf %6, %5 : vector<16x64xf32>
    %cst_6 = arith.constant 0.707106769 : f32
    %8 = vector.broadcast %cst_6 : f32 to vector<16x64xf32>
    %9 = arith.mulf %5, %8 : vector<16x64xf32>
    %10 = math.erf %9 : vector<16x64xf32>
    %cst_7 = arith.constant 1.000000e+00 : f32
    %11 = vector.broadcast %cst_7 : f32 to vector<16x64xf32>
    %12 = arith.addf %11, %10 : vector<16x64xf32>
    %13 = arith.mulf %7, %12 : vector<16x64xf32>
    %c0_8 = arith.constant 0 : index
    %c0_9 = arith.constant 0 : index
    %14 = vector.load %arg3[%c0_8, %c0_9] : memref<64x10xf32, #tpu.memory_space<vmem>>, vector<64x10xf32>
    %cst_10 = arith.constant dense<0.000000e+00> : vector<16x10xf32>
    %15 = tpu.matmul %13, %14, %cst_10 {dimension_numbers = #tpu.dot_dimension_numbers<[1], [0], [0], [1], [0, 0, 1, 1], [], []>} : vector<16x64xf32>, vector<64x10xf32>, vector<16x10xf32> -> vector<16x10xf32>
    %c0_11 = arith.constant 0 : index
    %c0_12 = arith.constant 0 : index
    %16 = vector.load %arg4[%c0_11, %c0_12] : memref<1x10xf32, #tpu.memory_space<vmem>>, vector<1x10xf32>
    %17 = vector.broadcast %16 : vector<1x10xf32> to vector<16x10xf32>
    %18 = arith.addf %15, %17 : vector<16x10xf32>
    %cst_13 = arith.constant 5.000000e-01 : f32
    %19 = vector.broadcast %cst_13 : f32 to vector<16x10xf32>
    %20 = arith.mulf %19, %18 : vector<16x10xf32>
    %cst_14 = arith.constant 0.707106769 : f32
    %21 = vector.broadcast %cst_14 : f32 to vector<16x10xf32>
    %22 = arith.mulf %18, %21 : vector<16x10xf32>
    %23 = math.erf %22 : vector<16x10xf32>
    %cst_15 = arith.constant 1.000000e+00 : f32
    %24 = vector.broadcast %cst_15 : f32 to vector<16x10xf32>
    %25 = arith.addf %24, %23 : vector<16x10xf32>
    %26 = arith.mulf %20, %25 : vector<16x10xf32>
    %27 = vector.shape_cast %26 : vector<16x10xf32> to vector<2x8x10xf32>
    %cst_16 = arith.constant dense<0.000000e+00> : vector<2x10xf32>
    %28 = vector.multi_reduction <add>, %27, %cst_16 [1] : vector<2x8x10xf32> to vector<2x10xf32>
    %cst_17 = arith.constant 8.000000e+00 : f32
    %29 = vector.broadcast %cst_17 : f32 to vector<2x10xf32>
    %30 = arith.divf %28, %29 : vector<2x10xf32>
    %cst_18 = arith.constant 2.000000e+01 : f32
    %31 = vector.broadcast %cst_18 : f32 to vector<2x10xf32>
    %32 = arith.cmpf ogt, %30, %31 : vector<2x10xf32>
    %cst_19 = arith.constant 2.000000e+01 : f32
    %33 = vector.broadcast %cst_19 : f32 to vector<2x10xf32>
    %34 = arith.minimumf %30, %33 : vector<2x10xf32>
    %35 = math.exp %34 : vector<2x10xf32>
    %36 = math.log1p %35 : vector<2x10xf32>
    %37 = arith.select %32, %30, %36 : vector<2x10xi1>, vector<2x10xf32>
    %c0_20 = arith.constant 0 : index
    %c0_21 = arith.constant 0 : index
    %38 = vector.load %arg5[%c0_20, %c0_21] : memref<2x10xf32, #tpu.memory_space<vmem>>, vector<2x10xf32>
    tpu.vector_store %arg5[%c0_20, %c0_21], %37 {strides = array<i32>} : memref<2x10xf32, #tpu.memory_space<vmem>>, vector<2x10xf32>,
    return
  }
}

</mosaic_0001>

<llo_original>
// kernel: adapter_forward.1
$region0: #{adapter_forward.1}
  #allocation0 [shape = 'u32[]', space=smem, size = 0x4, offset = 0x4, fixed_abs, tag = 'smem constant byte address 0x4 - core index']
  #allocation1 [shape = 'u32[144,128]{1,0:T(1,128)}', space=vmem, size = 0x12000, scoped, tag = 'internal scratch']
  %s0 = inlined_call_operand.vmem [shape: f32[16,10], index: 0, kind: input, shape index: {}]
  %s1 = inlined_call_operand.vmem [shape: f32[10,64], index: 1, kind: input, shape index: {}]
  %s2 = inlined_call_operand.vmem [shape: f32[1,64], index: 2, kind: input, shape index: {}]
  %s3 = inlined_call_operand.vmem [shape: f32[64,10], index: 3, kind: input, shape index: {}]
  %s4 = inlined_call_operand.vmem [shape: f32[1,10], index: 4, kind: input, shape index: {}]
  %s5 = inlined_call_operand.hbm [shape: f32[2,10], index: 5, kind: output, shape index: {}]
  %s6 = sld [smem:[#allocation0]]
  $region30: #{adapter_forward.1} parent=0
    _
  %s8 = ssub.s32 1, %s6
  %s9 = scalar_select 0, %s8, %s6
  $region1: #{adapter_forward.1} parent=0
    #allocation2 [shape = 'u8[1024]{0}', space=vmem, size = 0x400, scoped, tag = 'output window, operand 0, single buffered']
    #allocation3 [shape = 's32[1]{0}', space=sflag, size = 0x4, scoped, tag = 'scoped memory for adapter_forward.1']
    %10 = vsyncpa [#allocation3], 0
    // Predicated region
    $region2: #{adapter_forward.1} parent=1 // pred_check
      _
    $region3: #{adapter_forward.1} parent=1 // pred_check_branch
      %12 = sbr.rel (0) target = $region5
    $region4: #{adapter_forward.1} parent=1 // pred_region
      _
    $region5: #{adapter_forward.1} parent=1 // pred_fallthru
      _
    // Predicated region
    $region6: #{adapter_forward.1} parent=1 // pred_check
      _
    $region7: #{adapter_forward.1} parent=1 // pred_check_branch
      %14 = sbr.rel (0) target = $region9
    $region8: #{adapter_forward.1} parent=1 // pred_region
      _
    $region9: #{adapter_forward.1} parent=1 // pred_fallthru
      _
    // Predicated region
    $region10: #{adapter_forward.1} parent=1 // pred_check
      _
    $region11: #{adapter_forward.1} parent=1 // pred_check_branch
      %16 = sbr.rel (0) target = $region13
    $region12: #{adapter_forward.1} parent=1 // pred_region
      _
    $region13: #{adapter_forward.1} parent=1 // pred_fallthru
      _
    // Predicated region
    $region14: #{adapter_forward.1} parent=1 // pred_check
      _
    $region15: #{adapter_forward.1} parent=1 // pred_check_branch
      %18 = sbr.rel (0) target = $region17
    $region16: #{adapter_forward.1} parent=1 // pred_region
      _
    $region17: #{adapter_forward.1} parent=1 // pred_fallthru
      _
    // Predicated region
    $region18: #{adapter_forward.1} parent=1 // pred_check
      _
    $region19: #{adapter_forward.1} parent=1 // pred_check_branch
      %20 = sbr.rel (0) target = $region21
    $region20: #{adapter_forward.1} parent=1 // pred_region
      _
    $region21: #{adapter_forward.1} parent=1 // pred_fallthru
      _
    %v21 = vld [vmem:[%s0] sm:$0xff]
    %v22 = vld [vmem:[%s0 + $0x8] sm:$0xff]
    %v23 = vld [vmem:[%s1] sm:$0xff]
    %v24 = vld [vmem:[%s1 + $0x8] sm:$0x3]
    %v25 = vld [vmem:[%s2] sm:$0x1]
    %v27 = vlaneseq
    %v28 = vshrl.u32 %v27, 7
    %v29 = vsub.s32 0, %v28
    %v30 = vrot.slane %v25, %v29
    %vm32 = vcmask 80896
    %v34 = vsel %vm32, %v21, 0
    %v37 = vsel %vm32, %v22, 0
    %vm39 = vcmask 1041408
    %v41 = vsel %vm39, %v24, 0
    %43 = vmatprep.subr.mxu0 0.0
    %44 = vmatpush1.msra.mxu0 %v23
    %45 = vmatprep.subr.mxu0 0.0
    %46 = vmatpush1.msra.mxu0 %v41
    %47 = vmatprep.subr.mxu0 0.0
    %48 = vmatpush1.msra.mxu0 0.0
    %49 = vmatprep.subr.mxu0 0.0
    %50 = vmatpush1.msra.mxu0 0.0
    %51 = vmatprep.subr.mxu0 0.0
    %52 = vmatpush1.msra.mxu0 0.0
    %53 = vmatprep.subr.mxu0 0.0
    %54 = vmatpush1.msra.mxu0 0.0
    %55 = vmatprep.subr.mxu0 0.0
    %56 = vmatpush1.msra.mxu0 0.0
    %57 = vmatprep.subr.mxu0 0.0
    %58 = vmatpush1.msra.mxu0 0.0
    %59 = vmatprep.subr.mxu0 0.0
    %60 = vmatpush1.msra.mxu0 0.0
    %61 = vmatprep.subr.mxu0 0.0
    %62 = vmatpush1.msra.mxu0 0.0
    %63 = vmatprep.subr.mxu0 0.0
    %64 = vmatpush1.msra.mxu0 0.0
    %65 = vmatprep.subr.mxu0 0.0
    %66 = vmatpush1.msra.mxu0 0.0
    %67 = vmatprep.subr.mxu0 0.0
    %68 = vmatpush1.msra.mxu0 0.0
    %69 = vmatprep.subr.mxu0 0.0
    %70 = vmatpush1.msra.mxu0 0.0
    %71 = vmatprep.subr.mxu0 0.0
    %72 = vmatpush1.msra.mxu0 0.0
    %73 = vmatprep.subr.mxu0 0.0
    %74 = vmatpush1.msra.mxu0 0.0
    %75 = vmatprep.subr.mxu0 0.0
    %76 = vmatpush1.msra.mxu0 0.0
    %77 = vmatprep.subr.mxu0 0.0
    %78 = vmatpush1.msra.mxu0 0.0
    %79 = vmatprep.subr.mxu0 0.0
    %80 = vmatpush1.msra.mxu0 0.0
    %81 = vmatprep.subr.mxu0 0.0
    %82 = vmatpush1.msra.mxu0 0.0
    %83 = vmatprep.subr.mxu0 0.0
    %84 = vmatpush1.msra.mxu0 0.0
    %85 = vmatprep.subr.mxu0 0.0
    %86 = vmatpush1.msra.mxu0 0.0
    %87 = vmatprep.subr.mxu0 0.0
    %88 = vmatpush1.msra.mxu0 0.0
    %89 = vmatprep.subr.mxu0 0.0
    %90 = vmatpush1.msra.mxu0 0.0
    %91 = vmatprep.subr.mxu0 0.0
    %92 = vmatpush1.msra.mxu0 0.0
    %93 = vmatprep.subr.mxu0 0.0
    %94 = vmatpush1.msra.mxu0 0.0
    %95 = vmatprep.subr.mxu0 0.0
    %96 = vmatpush1.msra.mxu0 0.0
    %97 = vmatprep.subr.mxu0 0.0
    %98 = vmatpush1.msra.mxu0 0.0
    %99 = vmatprep.subr.mxu0 0.0
    %100 = vmatpush1.msra.mxu0 0.0
    %101 = vmatprep.subr.mxu0 0.0
    %102 = vmatpush1.msra.mxu0 0.0
    %103 = vmatprep.subr.mxu0 0.0
    %104 = vmatpush1.msra.mxu0 0.0
    %105 = vmatprep.subr.mxu0 0.0
    %106 = vmatpush1.msra.mxu0 0.0
    %107 = vmatprep.mubr.f32.mxu0 0.0
    %108 = vmatmul.mubr.f32.gmra.mrb[0].mxu0 %v34
    %v109 = vpop.f32.mrb[0].mxu0
    %v110 = vadd.f32 %v30, %v109
    %v111 = vpop.f32.mrb[0].mxu0
    %112 = vmatprep.mubr.f32.mxu0 0.0
    %113 = vmatmul.mubr.f32.gmra.mrb[0].mxu0 %v37
    %v114 = vpop.f32.mrb[0].mxu0
    %v115 = vadd.f32 %v30, %v114
    %v116 = vpop.f32.mrb[0].mxu0
    %117 = vdwg.mxu0
    %v118 = vmul.f32 %v110, 0.5
    %v119 = vmul.f32 %v115, 0.5
    %v120 = vmul.f32 %v110, 0.70710677
    %v121 = vmul.f32 %v115, 0.70710677
    %v122 = verf.f32.pop %v120
    %v123 = verf.f32.pop %v121
    %v124 = vadd.f32 %v122, 1.0
    %v125 = vadd.f32 %v123, 1.0
    %v126 = vmul.f32 %v118, %v124
    %v127 = vmul.f32 %v119, %v125
    %v128 = vld [vmem:[%s3] sm:$0xff]
    %v129 = vld [vmem:[%s3 + $0x8] sm:$0xff]
    %v130 = vld [vmem:[%s3 + $0x10] sm:$0xff]
    %v131 = vld [vmem:[%s3 + $0x18] sm:$0xff]
    %v132 = vld [vmem:[%s3 + $0x20] sm:$0xff]
    %v133 = vld [vmem:[%s3 + $0x28] sm:$0xff]
    %v134 = vld [vmem:[%s3 + $0x30] sm:$0xff]
    %v135 = vld [vmem:[%s3 + $0x38] sm:$0xff]
    %v136 = vld [vmem:[%s4] sm:$0x1]
    %v138 = vlaneseq
    %v139 = vshrl.u32 %v138, 7
    %v140 = vsub.s32 0, %v139
    %v141 = vrot.slane %v136, %v140
    %vm143 = vcmask 523264
    %v145 = vsel %vm143, %v126, 0
    %v148 = vsel %vm143, %v127, 0
    %150 = vmatprep.subr.mxu0 0.0
    %151 = vmatpush1.msra.mxu0 %v128
    %152 = vmatprep.subr.mxu0 0.0
    %153 = vmatpush1.msra.mxu0 %v129
    %154 = vmatprep.subr.mxu0 0.0
    %155 = vmatpush1.msra.mxu0 %v130
    %156 = vmatprep.subr.mxu0 0.0
    %157 = vmatpush1.msra.mxu0 %v131
    %158 = vmatprep.subr.mxu0 0.0
    %159 = vmatpush1.msra.mxu0 %v132
    %160 = vmatprep.subr.mxu0 0.0
    %161 = vmatpush1.msra.mxu0 %v133
    %162 = vmatprep.subr.mxu0 0.0
    %163 = vmatpush1.msra.mxu0 %v134
    %164 = vmatprep.subr.mxu0 0.0
    %165 = vmatpush1.msra.mxu0 %v135
    %166 = vmatprep.subr.mxu0 0.0
    %167 = vmatpush1.msra.mxu0 0.0
    %168 = vmatprep.subr.mxu0 0.0
    %169 = vmatpush1.msra.mxu0 0.0
    %170 = vmatprep.subr.mxu0 0.0
    %171 = vmatpush1.msra.mxu0 0.0
    %172 = vmatprep.subr.mxu0 0.0
    %173 = vmatpush1.msra.mxu0 0.0
    %174 = vmatprep.subr.mxu0 0.0
    %175 = vmatpush1.msra.mxu0 0.0
    %176 = vmatprep.subr.mxu0 0.0
    %177 = vmatpush1.msra.mxu0 0.0
    %178 = vmatprep.subr.mxu0 0.0
    %179 = vmatpush1.msra.mxu0 0.0
    %180 = vmatprep.subr.mxu0 0.0
    %181 = vmatpush1.msra.mxu0 0.0
    %182 = vmatprep.subr.mxu0 0.0
    %183 = vmatpush1.msra.mxu0 0.0
    %184 = vmatprep.subr.mxu0 0.0
    %185 = vmatpush1.msra.mxu0 0.0
    %186 = vmatprep.subr.mxu0 0.0
    %187 = vmatpush1.msra.mxu0 0.0
    %188 = vmatprep.subr.mxu0 0.0
    %189 = vmatpush1.msra.mxu0 0.0
    %190 = vmatprep.subr.mxu0 0.0
    %191 = vmatpush1.msra.mxu0 0.0
    %192 = vmatprep.subr.mxu0 0.0
    %193 = vmatpush1.msra.mxu0 0.0
    %194 = vmatprep.subr.mxu0 0.0
    %195 = vmatpush1.msra.mxu0 0.0
    %196 = vmatprep.subr.mxu0 0.0
    %197 = vmatpush1.msra.mxu0 0.0
    %198 = vmatprep.subr.mxu0 0.0
    %199 = vmatpush1.msra.mxu0 0.0
    %200 = vmatprep.subr.mxu0 0.0
    %201 = vmatpush1.msra.mxu0 0.0
    %202 = vmatprep.subr.mxu0 0.0
    %203 = vmatpush1.msra.mxu0 0.0
    %204 = vmatprep.subr.mxu0 0.0
    %205 = vmatpush1.msra.mxu0 0.0
    %206 = vmatprep.subr.mxu0 0.0
    %207 = vmatpush1.msra.mxu0 0.0
    %208 = vmatprep.subr.mxu0 0.0
    %209 = vmatpush1.msra.mxu0 0.0
    %210 = vmatprep.subr.mxu0 0.0
    %211 = vmatpush1.msra.mxu0 0.0
    %212 = vmatprep.subr.mxu0 0.0
    %213 = vmatpush1.msra.mxu0 0.0
    %214 = vmatprep.mubr.f32.mxu0 0.0
    %215 = vmatmul.mubr.f32.gmra.mrb[0].mxu0 %v145
    %v216 = vpop.f32.mrb[0].mxu0
    %v217 = vadd.f32 %v141, %v216
    %v218 = vpop.f32.mrb[0].mxu0
    %219 = vmatprep.mubr.f32.mxu0 0.0
    %220 = vmatmul.mubr.f32.gmra.mrb[0].mxu0 %v148
    %v221 = vpop.f32.mrb[0].mxu0
    %v222 = vadd.f32 %v141, %v221
    %v223 = vpop.f32.mrb[0].mxu0
    %224 = vdwg.mxu0
    %v225 = vmul.f32 %v217, 0.5
    %v226 = vmul.f32 %v222, 0.5
    %v227 = vmul.f32 %v217, 0.70710677
    %v228 = vmul.f32 %v222, 0.70710677
    %v229 = verf.f32.pop %v227
    %v230 = verf.f32.pop %v228
    %v231 = vadd.f32 %v229, 1.0
    %v232 = vadd.f32 %v230, 1.0
    %v233 = vmul.f32 %v225, %v231
    %v234 = vmul.f32 %v226, %v232
    %v235 = vsel %vm32, %v233, 0.0
    %v236 = vrot.slane %v235, 4
    %v237 = vadd.f32 %v235, %v236
    %v238 = vrot.slane %v237, 2
    %v239 = vadd.f32 %v237, %v238
    %v240 = vrot.slane %v239, 1
    %v241 = vadd.f32 %v239, %v240
    %v242 = vsel %vm32, %v234, 0.0
    %v243 = vrot.slane %v242, 4
    %v244 = vadd.f32 %v242, %v243
    %v245 = vrot.slane %v244, 2
    %v246 = vadd.f32 %v244, %v245
    %v247 = vrot.slane %v246, 1
    %v248 = vadd.f32 %v246, %v247
    %v249 = vrcp.pop 8.0
    %v250 = vmul.f32 %v241, %v249
    %v251 = vmul.f32 %v248, %v249
    %vm252 = vcmp.gt.f32.partialorder %v250, 20.0
    %vm253 = vcmp.gt.f32.partialorder %v251, 20.0
    %v254 = vmin.f32 %v250, 20.0
    %v255 = vmin.f32 %v251, 20.0
    %v256 = vmul.f32 %v254, 1.442695
    %v257 = vpow.pop %v256
    %v258 = vmul.f32 %v255, 1.442695
    %v259 = vpow.pop %v258
    %v260 = vadd.f32 %v257, 1.0
    %v261 = vlog2.pop %v260
    %v262 = vmul.f32 %v261, 0.6931472
    %v263 = vmul.f32 -0.5, %v257
    %v264 = vadd.f32 %v263, 1.0
    %v265 = vmul.f32 %v264, %v257
    %v266 = vand.u32 2147483647, %v257
    %vm267 = vcmp.lt.f32.partialorder %v266, 0.0004427343
    %v268 = vsel %vm267, %v265, %v262
    %v269 = vadd.f32 %v259, 1.0
    %v270 = vlog2.pop %v269
    %v271 = vmul.f32 %v270, 0.6931472
    %v272 = vmul.f32 -0.5, %v259
    %v273 = vadd.f32 %v272, 1.0
    %v274 = vmul.f32 %v273, %v259
    %v275 = vand.u32 2147483647, %v259
    %vm276 = vcmp.lt.f32.partialorder %v275, 0.0004427343
    %v277 = vsel %vm276, %v274, %v271
    %v278 = vsel %vm252, %v250, %v268
    %v279 = vsel %vm253, %v251, %v277
    %vm282 = vcmask 1041409
    %v283 = vsel %vm282, %v279, %v278
    %vm285 = vcmask 74752
    %286 = vst.msk [vmem:[#allocation2] sm:$0x3] %vm285, %v283
    // Predicated region
    $region22: #{adapter_forward.1} parent=1 // pred_check
      _
    $region23: #{adapter_forward.1} parent=1 // pred_check_branch
      %288 = sbr.rel (0) target = $region25
    $region24: #{adapter_forward.1} parent=1 // pred_region
      %s290 = ssub.s32 32, 32
      %291 = vsyncadd [#allocation3], %s290
      %s293 = sshll.u32 [#allocation2], 4
      %s294 = int_to_ptr.vmem [resolvable:$true] %s293
      %296 = dma.vmem_to_hbm [thread:$0]  %s294, 32, %s5, [#allocation3]
    $region25: #{adapter_forward.1} parent=1 // pred_fallthru
      _
    // Predicated region
    $region26: #{adapter_forward.1} parent=1 // pred_check
      _
    $region27: #{adapter_forward.1} parent=1 // pred_check_branch
      %298 = sbr.rel (0) target = $region29
    $region28: #{adapter_forward.1} parent=1 // pred_region
      %299 = dma.done [#allocation3], 32
    $region29: #{adapter_forward.1} parent=1 // pred_fallthru
      _
    %300 = vsyncpa [#allocation3], 1

</llo_original>
